<compile_context>
chip_gen: v7x
topology: tpu7x:2x2x1
jax: 0.10.0
libtpu: 0.0.40
codegen_flags: <defaults>
</compile_context>

<pallas_src>
import functools

import jax
import jax.numpy as jnp
from jax.experimental import pallas as pl
from jax.experimental.pallas import tpu as pltpu


def _bce_partial_sum_kernel(pred_ref, tgt_ref, out_ref, *, n_valid, tile_n):
    """One grid step = one lane-dense (R, tile_n) slab of flattened channels.

    Computes the numerically-stable BCE-with-logits loss elementwise, masks
    out padded lanes, and writes this slab's partial SUM to out_ref[0, 0].
    The final averaging over (B * n_organs * H * W) happens in the wrapper.
    """
    i = pl.program_id(0)

    x = pred_ref[...].astype(jnp.float32)   # logits
    z = tgt_ref[...].astype(jnp.float32)    # targets (may arrive as bf16/int8)

    # Numerically-stable BCE with logits (same formula torch uses):
    #   max(x, 0) - x*z + log(1 + exp(-|x|))
    loss = jnp.maximum(x, 0.0) - x * z + jnp.log1p(jnp.exp(-jnp.abs(x)))

    # Mask out spatial padding columns (col >= true H*W).
    col = i * tile_n + jax.lax.broadcasted_iota(jnp.int32, x.shape, dimension=1)
    loss = jnp.where(col < n_valid, loss, 0.0)

    out_ref[0, 0] = jnp.sum(loss)


def multi_bce_loss(predict, target, organ_list):
    """Pallas implementation of Multi_BCELoss.forward.

    predict, target: (B, C, H, W) arrays (NCHW, like PyTorch).  `target` may be
                     a reduced dtype (bf16 / int8); it is cast to f32 in-kernel.
    organ_list:      1-based channel indices (TEMPLATE['curvas']).
    Returns a scalar float32 loss identical to the PyTorch module.
    """
    assert predict.shape[2:] == target.shape[2:], "predict & target shape do not match"
    assert predict.shape[:2] == target.shape[:2]
    B, C, H, W = predict.shape

    organs = [int(o) - 1 for o in organ_list]           # 0-based channels
    n_organs = len(organs)

    # --- channel selection in the wrapper (no scalar-prefetch gather) -------
    if organs == list(range(organs[0], organs[0] + n_organs)):
        # Contiguous channel range -> cheap slice, contiguous HBM reads.
        pred_sel = jax.lax.slice_in_dim(predict, organs[0], organs[0] + n_organs, axis=1)
        tgt_sel = jax.lax.slice_in_dim(target, organs[0], organs[0] + n_organs, axis=1)
    else:
        idx = jnp.asarray(organs, dtype=jnp.int32)
        pred_sel = jnp.take(predict, idx, axis=1)
        tgt_sel = jnp.take(target, idx, axis=1)

    # --- flatten to a lane-dense 2-D slab -----------------------------------
    R = B * n_organs           # one row per (batch, organ) pair
    N = H * W                  # true spatial element count per channel
    pred2 = pred_sel.reshape(R, N)
    tgt2 = tgt_sel.reshape(R, N)

    # --- pick a lane tile: ~2 MiB per f32 input tile, multiple of 128 -------
    # (2 inputs x 2 pipeline buffers x 2 MiB = 8 MiB << 16 MiB v5e scoped VMEM,
    #  and comfortably inside v7x's smaller VMEM budget.)
    per_tile_elems = (2 * 1024 * 1024) // 4
    tn = (per_tile_elems // max(R, 1)) // 128 * 128
    tn = max(128, min(tn, ((N + 127) // 128) * 128))

    num_tiles = pl.cdiv(N, tn)
    n_pad = num_tiles * tn
    if n_pad != N:
        pred2 = jnp.pad(pred2, ((0, 0), (0, n_pad - N)))
        tgt2 = jnp.pad(tgt2, ((0, 0), (0, n_pad - N)))

    kernel = functools.partial(_bce_partial_sum_kernel, n_valid=N, tile_n=tn)

    partial_sums = pl.pallas_call(
        kernel,
        out_shape=jax.ShapeDtypeStruct((num_tiles, 1), jnp.float32),
        grid=(num_tiles,),
        in_specs=[
            pl.BlockSpec((R, tn), lambda i: (0, i)),
            pl.BlockSpec((R, tn), lambda i: (0, i)),
        ],
        out_specs=pl.BlockSpec(
            (1, 1),
            lambda i: (i, 0),
            memory_space=pltpu.MemorySpace.SMEM,
        ),
        compiler_params=pltpu.CompilerParams(
            dimension_semantics=("parallel",),
        ),
    )(pred2, tgt2)

    # Final reduce + divide in JAX: average of per-channel means == global mean
    # over all selected elements (all channels share the same H*W).
    return jnp.sum(partial_sums) / jnp.float32(R * N)


def multi_bce_loss_ref(predict, target, organ_list):
    """Pure-JAX reference mirroring the PyTorch module (for verification)."""
    losses = []
    B = predict.shape[0]
    for b in range(B):
        for organ in organ_list:
            x = predict[b, organ - 1].astype(jnp.float32)
            z = target[b, organ - 1].astype(jnp.float32)
            per_elem = jnp.maximum(x, 0.0) - x * z + jnp.log1p(jnp.exp(-jnp.abs(x)))
            losses.append(jnp.mean(per_elem))
    losses = jnp.stack(losses)
    return jnp.sum(losses) / losses.shape[0]


if __name__ == "__main__":
    # Small synthetic problem: batch=2, channels=4, spatial=16x16,
    # TEMPLATE['curvas'] = [1, 2, 3] (num_classes=3 organ channels used).
    key = jax.random.PRNGKey(0)
    k_pred, k_tgt = jax.random.split(key)

    B, C, H, W = 2, 4, 16, 16
    TEMPLATE = {"curvas": [1, 2, 3]}

    predict = jax.random.normal(k_pred, (B, C, H, W), dtype=jnp.float32)
    target = jax.random.bernoulli(k_tgt, p=0.3, shape=(B, C, H, W)).astype(jnp.float32)

    # `name` argument of the PyTorch forward is unused; omitted here.
    loss = multi_bce_loss(predict, target, TEMPLATE["curvas"])
    loss = jax.block_until_ready(loss)

    ref = multi_bce_loss_ref(predict, target, TEMPLATE["curvas"])
    assert jnp.allclose(loss, ref, rtol=1e-5, atol=1e-5), (loss, ref)

    print("KERNEL_OK")
</pallas_src>

<mosaic_0001>
module attributes {stable_mosaic.version = 11 : i64} {
  func.func @_bce_partial_sum_kernel(%arg0: i32, %arg1: memref<6x256xf32, #tpu.memory_space<vmem>>, %arg2: memref<6x256xf32, #tpu.memory_space<vmem>>, %arg3: memref<1x1xf32, #tpu.memory_space<smem>>) attributes {dimension_semantics = [#tpu.dimension_semantics<parallel>], iteration_bounds = array<i64: 1>, scalar_prefetch = 0 : i64, scratch_operands = 0 : i64, tpu.core_type = #tpu.core_type<tc>, window_params = [{transform_indices = @transform_0, window_bounds = array<i64: 6, 256>}, {transform_indices = @transform_1, window_bounds = array<i64: 6, 256>}, {transform_indices = @transform_2, window_bounds = array<i64: 1, 1>}]} {
    %c0 = arith.constant 0 : index
    %c0_0 = arith.constant 0 : index
    %0 = vector.load %arg1[%c0, %c0_0] : memref<6x256xf32, #tpu.memory_space<vmem>>, vector<6x256xf32>
    %c0_1 = arith.constant 0 : index
    %c0_2 = arith.constant 0 : index
    %1 = vector.load %arg2[%c0_1, %c0_2] : memref<6x256xf32, #tpu.memory_space<vmem>>, vector<6x256xf32>
    %cst = arith.constant 0.000000e+00 : f32
    %2 = vector.broadcast %cst : f32 to vector<6x256xf32>
    %3 = arith.maximumf %0, %2 : vector<6x256xf32>
    %4 = arith.mulf %0, %1 : vector<6x256xf32>
    %5 = arith.subf %3, %4 : vector<6x256xf32>
    %6 = math.absf %0 : vector<6x256xf32>
    %cst_3 = arith.constant 0.000000e+00 : f32
    %7 = vector.broadcast %cst_3 : f32 to vector<6x256xf32>
    %8 = arith.subf %7, %6 : vector<6x256xf32>
    %9 = math.exp %8 : vector<6x256xf32>
    %10 = math.log1p %9 : vector<6x256xf32>
    %11 = arith.addf %5, %10 : vector<6x256xf32>
    %c256_i32 = arith.constant 256 : i32
    %12 = arith.muli %arg0, %c256_i32 : i32
    %13 = tpu.iota {dimensions = array<i32: 1>} : vector<6x256xi32>
    %14 = vector.broadcast %12 : i32 to vector<6x256xi32>
    %15 = arith.addi %14, %13 : vector<6x256xi32>
    %c256_i32_4 = arith.constant 256 : i32
    %16 = vector.broadcast %c256_i32_4 : i32 to vector<6x256xi32>
    %17 = arith.cmpi slt, %15, %16 : vector<6x256xi32>
    %cst_5 = arith.constant 0.000000e+00 : f32
    %18 = vector.broadcast %cst_5 : f32 to vector<6x256xf32>
    %19 = arith.select %17, %11, %18 : vector<6x256xi1>, vector<6x256xf32>
    %20 = vector.shape_cast %19 : vector<6x256xf32> to vector<1x6x256xf32>
    %cst_6 = arith.constant dense<0.000000e+00> : vector<1xf32>
    %21 = vector.multi_reduction <add>, %20, %cst_6 [1, 2] : vector<1x6x256xf32> to vector<1xf32>
    %22 = vector.shape_cast %21 : vector<1xf32> to vector<1x1x1xf32>
    %23 = vector.extract %22[0, 0, 0] : f32 from vector<1x1x1xf32>
    %c0_7 = arith.constant 0 : index
    %c0_8 = arith.constant 0 : index
    %24 = memref.load %arg3[%c0_7, %c0_8] : memref<1x1xf32, #tpu.memory_space<smem>>
    memref.store %23, %arg3[%c0_7, %c0_8] : memref<1x1xf32, #tpu.memory_space<smem>>
    return
  }
  func.func @transform_0(%arg0: i32) -> (i32, i32) {
    %c0_i32 = arith.constant 0 : i32
    %c0_i32_0 = arith.constant 0 : i32
    return %c0_i32, %arg0 : i32, i32
  }
  func.func @transform_1(%arg0: i32) -> (i32, i32) {
    %c0_i32 = arith.constant 0 : i32
    %c0_i32_0 = arith.constant 0 : i32
    return %c0_i32, %arg0 : i32, i32
  }
  func.func @transform_2(%arg0: i32) -> (i32, i32) {
    %c0_i32 = arith.constant 0 : i32
    %c0_i32_0 = arith.constant 0 : i32
    return %arg0, %c0_i32 : i32, i32
  }
}

</mosaic_0001>

<llo_original>
// kernel: tpu_custom_call.1
$region0: #{tpu_custom_call.1}
  #allocation0 [shape = 'u32[]', space=smem, size = 0x4, offset = 0x4, fixed_abs, tag = 'smem constant byte address 0x4 - core index']
  #allocation1 [shape = 'u32[144,128]{1,0:T(1,128)}', space=vmem, size = 0x12000, scoped, tag = 'internal scratch']
  %s0 = inlined_call_operand.hbm [shape: f32[6,256], index: 0, kind: input, shape index: {}]
  %s1 = inlined_call_operand.hbm [shape: f32[6,256], index: 1, kind: input, shape index: {}]
  %s2 = inlined_call_operand.hbm [shape: f32[1,1], index: 2, kind: output, shape index: {}]
  %s3 = sld [smem:[#allocation0]]
  $region26: #{tpu_custom_call.1} parent=0
    _
  %s5 = ssub.s32 1, %s3
  %s6 = scalar_select 0, %s5, %s3
  $region1: #{tpu_custom_call.1} parent=0
    #allocation2 [shape = 'u8[8192]{0}', space=vmem, size = 0x2000, scoped, tag = 'input window, operand 0, single buffered']
    #allocation3 [shape = 's32[1]{0}', space=sflag, size = 0x4, scoped, tag = 'scoped memory for tpu_custom_call.1']
    #allocation4 [shape = 's32[1]{0}', space=sflag, size = 0x4, scoped, tag = 'scoped memory for tpu_custom_call.1']
    #allocation5 [shape = 'u8[8192]{0}', space=vmem, size = 0x2000, scoped, tag = 'input window, operand 1, single buffered']
    #allocation6 [shape = 's32[1]{0}', space=sflag, size = 0x4, scoped, tag = 'scoped memory for tpu_custom_call.1']
    #allocation7 [shape = 'u8[512]{0}', space=smem, size = 0x200, scoped, tag = 'output window, operand 0, single buffered']
    %7 = vsyncpa [#allocation3], 0
    %8 = vsyncpa [#allocation6], 0
    %9 = vsyncpa [#allocation4], 0
    // Predicated region
    $region2: #{tpu_custom_call.1} parent=1 // pred_check
      _
    $region3: #{tpu_custom_call.1} parent=1 // pred_check_branch
      %11 = sbr.rel (0) target = $region5
    $region4: #{tpu_custom_call.1} parent=1 // pred_region
      %s13 = ssub.s32 256, 256
      %14 = vsyncadd [#allocation3], %s13
      %s16 = sshll.u32 [#allocation2], 4
      %s17 = int_to_ptr.vmem [resolvable:$true] %s16
      %19 = dma.hbm_to_vmem [thread:$0]  %s0, 256, %s17, [#allocation3]
    $region5: #{tpu_custom_call.1} parent=1 // pred_fallthru
      _
    // Predicated region
    $region6: #{tpu_custom_call.1} parent=1 // pred_check
      _
    $region7: #{tpu_custom_call.1} parent=1 // pred_check_branch
      %21 = sbr.rel (0) target = $region9
    $region8: #{tpu_custom_call.1} parent=1 // pred_region
      %s23 = ssub.s32 256, 256
      %24 = vsyncadd [#allocation6], %s23
      %s26 = sshll.u32 [#allocation5], 4
      %s27 = int_to_ptr.vmem [resolvable:$true] %s26
      %29 = dma.hbm_to_vmem [thread:$0]  %s1, 256, %s27, [#allocation6]
    $region9: #{tpu_custom_call.1} parent=1 // pred_fallthru
      _
    // Predicated region
    $region10: #{tpu_custom_call.1} parent=1 // pred_check
      _
    $region11: #{tpu_custom_call.1} parent=1 // pred_check_branch
      %31 = sbr.rel (0) target = $region13
    $region12: #{tpu_custom_call.1} parent=1 // pred_region
      %32 = dma.done [#allocation3], 256
    $region13: #{tpu_custom_call.1} parent=1 // pred_fallthru
      _
    // Predicated region
    $region14: #{tpu_custom_call.1} parent=1 // pred_check
      _
    $region15: #{tpu_custom_call.1} parent=1 // pred_check_branch
      %34 = sbr.rel (0) target = $region17
    $region16: #{tpu_custom_call.1} parent=1 // pred_region
      %35 = dma.done [#allocation6], 256
    $region17: #{tpu_custom_call.1} parent=1 // pred_fallthru
      _
    %v36 = vld [vmem:[#allocation2] sm:$0x3f]
    %v37 = vld [vmem:[#allocation2 + $0x8] sm:$0x3f]
    %v38 = vld [vmem:[#allocation5] sm:$0x3f]
    %v39 = vld [vmem:[#allocation5 + $0x8] sm:$0x3f]
    %v40 = vmax.f32 %v36, 0.0
    %v41 = vmax.f32 %v37, 0.0
    %v42 = vmul.f32 %v36, %v38
    %v43 = vmul.f32 %v37, %v39
    %v44 = vsub.f32 %v40, %v42
    %v45 = vsub.f32 %v41, %v43
    %v46 = vand.u32 2147483647, %v36
    %v47 = vand.u32 2147483647, %v37
    %v48 = vsub.f32 0.0, %v46
    %v49 = vsub.f32 0.0, %v47
    %v50 = vmul.f32 %v48, 1.442695
    %v51 = vpow.pop %v50
    %v52 = vmul.f32 %v49, 1.442695
    %v53 = vpow.pop %v52
    %v54 = vadd.f32 %v51, 1.0
    %v55 = vlog2.pop %v54
    %v56 = vmul.f32 %v55, 0.6931472
    %v57 = vmul.f32 -0.5, %v51
    %v58 = vadd.f32 %v57, 1.0
    %v59 = vmul.f32 %v58, %v51
    %v60 = vand.u32 2147483647, %v51
    %vm61 = vcmp.lt.f32.partialorder %v60, 0.0004427343
    %v62 = vsel %vm61, %v59, %v56
    %v63 = vadd.f32 %v53, 1.0
    %v64 = vlog2.pop %v63
    %v65 = vmul.f32 %v64, 0.6931472
    %v66 = vmul.f32 -0.5, %v53
    %v67 = vadd.f32 %v66, 1.0
    %v68 = vmul.f32 %v67, %v53
    %v69 = vand.u32 2147483647, %v53
    %vm70 = vcmp.lt.f32.partialorder %v69, 0.0004427343
    %v71 = vsel %vm70, %v68, %v65
    %v72 = vadd.f32 %v44, %v62
    %v73 = vadd.f32 %v45, %v71
    %s74 = smul.u32 0, 256
    %v75 = vlaneseq
    %v76 = vand.u32 %v75, 127
    %v77 = vadd.s32 %v76, 128
    %v78 = vstv %s74
    %v79 = vadd.s32 %v78, %v76
    %v80 = vadd.s32 %v78, %v77
    %vm81 = vcmp.lt.s32.totalorder %v79, 256
    %vm82 = vcmp.lt.s32.totalorder %v80, 256
    %v83 = vsel %vm81, %v72, 0.0
    %v84 = vsel %vm82, %v73, 0.0
    %vm85 = vcmask 1045504
    %v86 = vsel %vm85, %v83, 0.0
    %v87 = vsel %vm85, %v84, 0.0
    %v88 = vadd.f32 %v86, %v87
    %89 = vadd.xlane.f32.xlu0 %v88
    %v90 = vpop.xlane.xlu0 %89
    %v91 = vrot.slane %v90, 4
    %v92 = vadd.f32 %v90, %v91
    %v93 = vrot.slane %v92, 2
    %v94 = vadd.f32 %v92, %v93
    %v95 = vrot.slane %v94, 1
    %v96 = vadd.f32 %v94, %v95
    %s97 = vtos %v96
    %s98 = scalar_lea.smem [#allocation7], 0
    %99 = sst [smem:[%s98]] %s97
    // Predicated region
    $region18: #{tpu_custom_call.1} parent=1 // pred_check
      _
    $region19: #{tpu_custom_call.1} parent=1 // pred_check_branch
      %101 = sbr.rel (0) target = $region21
    $region20: #{tpu_custom_call.1} parent=1 // pred_region
      %s103 = ssub.s32 16, 16
      %104 = vsyncadd [#allocation4], %s103
      %107 = dma.smem_to_hbm [#allocation7], 16, %s2, [#allocation4]
    $region21: #{tpu_custom_call.1} parent=1 // pred_fallthru
      _
    // Predicated region
    $region22: #{tpu_custom_call.1} parent=1 // pred_check
      _
    $region23: #{tpu_custom_call.1} parent=1 // pred_check_branch
      %109 = sbr.rel (0) target = $region25
    $region24: #{tpu_custom_call.1} parent=1 // pred_region
      %110 = dma.done [#allocation4], 16
    $region25: #{tpu_custom_call.1} parent=1 // pred_fallthru
      _
    %111 = sfence
    %112 = vsyncpa [#allocation3], 1
    %113 = vsyncpa [#allocation6], 1
    %114 = vsyncpa [#allocation4], 1

</llo_original>
